<compile_context>
chip_gen: v7x
topology: tpu7x:2x2x1
jax: 0.10.0
libtpu: 0.0.40
codegen_flags: <defaults>
</compile_context>

<pallas_src>
from functools import partial

import jax
import jax.numpy as jnp
from jax.experimental import pallas as pl
from jax.experimental.pallas import tpu as pltpu


LANE = 128  # padded width of fc2/fc3 outputs (lane-dense)
IN_FEATURES = 28 * 28


def mlp_kernel(x_ref, w1_ref, b1_ref, w2_ref, b2_ref, w3_ref, b3_ref, o_ref,
               *, fc1_dtype):
    # fc1 + relu: (TB, 784) @ (784, 128) -> (TB, 128)   (bf16 operands on v5e)
    h1 = jnp.dot(x_ref[...].astype(fc1_dtype), w1_ref[...].astype(fc1_dtype),
                 preferred_element_type=jnp.float32)
    h1 = jnp.maximum(h1 + b1_ref[...], 0.0)
    # fc2 + relu, padded 64 -> 128 lanes: (TB, 128) @ (128, 128) -> (TB, 128)
    h2 = jnp.dot(h1, w2_ref[...], preferred_element_type=jnp.float32)
    h2 = jnp.maximum(h2 + b2_ref[...], 0.0)
    # fc3, padded 10 -> 128 lanes: (TB, 128) @ (128, 128) -> (TB, 128)
    h3 = jnp.dot(h2, w3_ref[...], preferred_element_type=jnp.float32)
    o_ref[...] = (h3 + b3_ref[...]).astype(o_ref.dtype)


def _device_kind():
    try:
        return jax.devices()[0].device_kind.lower()
    except Exception:
        return ""


def _is_v5e(kind):
    return ("v5 lite" in kind) or ("v5e" in kind) or ("v5lite" in kind)


def _is_v7(kind):
    return ("v7" in kind) or ("tpu7" in kind)


def mnist_model_forward(x, params, tb=None, fc1_bf16=None):
    """x: (B, 1, 28, 28) float32 (NCHW like PyTorch). Returns logits (B, 10)."""
    w1, b1, w2, b2, w3, b3 = params
    # Accept PyTorch-style 1-D biases (N,) as well as (1, N).
    b1 = jnp.asarray(b1).reshape(1, -1)
    b2 = jnp.asarray(b2).reshape(1, -1)
    b3 = jnp.asarray(b3).reshape(1, -1)

    B = x.shape[0]
    x2d = x.reshape(B, IN_FEATURES)  # same as torch x.view(-1, 784)

    kind = _device_kind()
    if fc1_bf16 is None:
        fc1_bf16 = _is_v5e(kind)  # only v5e needs bf16 MXU operands
    if tb is None:
        tb = 2048 if _is_v7(kind) else 1024

    # Lane-dense weight padding (zero columns/rows; numerically inert):
    #   fc2: 64 -> 128 output lanes; fc3: 64 -> 128 input rows, 10 -> 128 lanes.
    w2p = jnp.pad(w2, ((0, 0), (0, LANE - w2.shape[1])))
    b2p = jnp.pad(b2, ((0, 0), (0, LANE - b2.shape[1])))
    w3p = jnp.pad(w3, ((0, LANE - w3.shape[0]), (0, LANE - w3.shape[1])))
    b3p = jnp.pad(b3, ((0, 0), (0, LANE - b3.shape[1])))

    # Batch tile: multiple of 8 (sublane constraint), capped by (rounded-up) B.
    TB = min(tb, max(8, ((B + 7) // 8) * 8))
    grid = (pl.cdiv(B, TB),)  # ragged last block handled by Pallas (no jnp.pad)

    def weight_spec(a):
        # Full block, constant index_map -> loaded once, VMEM-resident.
        return pl.BlockSpec(a.shape, lambda i: (0, 0))

    in_specs = [pl.BlockSpec((TB, IN_FEATURES), lambda i: (i, 0))] + [
        weight_spec(a) for a in (w1, b1, w2p, b2p, w3p, b3p)
    ]
    out_specs = pl.BlockSpec((TB, LANE), lambda i: (i, 0))

    weight_bytes = 4 * (w1.size + b1.size + w2p.size + b2p.size + w3p.size + b3p.size)
    n_rows = grid[0] * TB
    flops = 2 * n_rows * (IN_FEATURES * 128 + 128 * LANE + LANE * LANE)
    bytes_accessed = B * IN_FEATURES * 4 + weight_bytes + B * LANE * 4

    kernel = partial(mlp_kernel,
                     fc1_dtype=jnp.bfloat16 if fc1_bf16 else jnp.float32)

    out = pl.pallas_call(
        kernel,
        out_shape=jax.ShapeDtypeStruct((B, LANE), jnp.float32),
        grid=grid,
        in_specs=in_specs,
        out_specs=out_specs,
        compiler_params=pltpu.CompilerParams(
            dimension_semantics=("parallel",),
        ),
        cost_estimate=pl.CostEstimate(
            flops=flops, transcendentals=0, bytes_accessed=bytes_accessed
        ),
    )(x2d, w1, b1, w2p, b2p, w3p, b3p)

    # Drop the 118 zero output columns (rows already exactly B).
    return out[:, :10]


def init_params(key):
    """Deterministic init matching nn.Linear shapes (weights stored (in, out))."""
    k1, k2, k3, k4, k5, k6 = jax.random.split(key, 6)

    def uniform(k, shape, fan_in):
        bound = 1.0 / jnp.sqrt(jnp.float32(fan_in))
        return jax.random.uniform(k, shape, jnp.float32, -bound, bound)

    w1 = uniform(k1, (784, 128), 784)
    b1 = uniform(k2, (1, 128), 784)
    w2 = uniform(k3, (128, 64), 128)
    b2 = uniform(k4, (1, 64), 128)
    w3 = uniform(k5, (64, 10), 64)
    b3 = uniform(k6, (1, 10), 64)
    return (w1, b1, w2, b2, w3, b3)


def reference_forward(x, params):
    w1, b1, w2, b2, w3, b3 = params
    x2d = x.reshape(x.shape[0], -1)
    h1 = jnp.maximum(x2d @ w1 + b1, 0.0)
    h2 = jnp.maximum(h1 @ w2 + b2, 0.0)
    return h2 @ w3 + b3


if __name__ == "__main__":
    key = jax.random.PRNGKey(0)
    kx, kp = jax.random.split(key)
    # batch=2, NCHW MNIST-shaped input
    x = jax.random.normal(kx, (2, 1, 28, 28), dtype=jnp.float32)
    params = init_params(kp)

    out = mnist_model_forward(x, params)
    out = jax.block_until_ready(out)

    ref = reference_forward(x, params)
    assert out.shape == (2, 10)
    # bf16 fc1 operands (auto-enabled on v5e) shift numerics slightly vs f32 ref.
    tol = 2e-2 if _is_v5e(_device_kind()) else 1e-4
    assert jnp.allclose(out, ref, atol=tol, rtol=tol)

    print("KERNEL_OK")
</pallas_src>

<mosaic_0001>
module attributes {stable_mosaic.version = 11 : i64} {
  func.func @mlp_kernel(%arg0: i32, %arg1: memref<8x784xf32, #tpu.memory_space<vmem>>, %arg2: memref<784x128xf32, #tpu.memory_space<vmem>>, %arg3: memref<1x128xf32, #tpu.memory_space<vmem>>, %arg4: memref<128x128xf32, #tpu.memory_space<vmem>>, %arg5: memref<1x128xf32, #tpu.memory_space<vmem>>, %arg6: memref<128x128xf32, #tpu.memory_space<vmem>>, %arg7: memref<1x128xf32, #tpu.memory_space<vmem>>, %arg8: memref<8x128xf32, #tpu.memory_space<vmem>>) attributes {dimension_semantics = [#tpu.dimension_semantics<parallel>], iteration_bounds = array<i64: 1>, scalar_prefetch = 0 : i64, scratch_operands = 0 : i64, tpu.core_type = #tpu.core_type<tc>, window_params = [{transform_indices = @transform_0, window_bounds = array<i64: 8, 784>}, {pipeline_mode = #tpu.pipeline_mode<synchronous>, transform_indices = @transform_1, window_bounds = array<i64: 784, 128>}, {pipeline_mode = #tpu.pipeline_mode<synchronous>, transform_indices = @transform_2, window_bounds = array<i64: 1, 128>}, {pipeline_mode = #tpu.pipeline_mode<synchronous>, transform_indices = @transform_3, window_bounds = array<i64: 128, 128>}, {pipeline_mode = #tpu.pipeline_mode<synchronous>, transform_indices = @transform_4, window_bounds = array<i64: 1, 128>}, {pipeline_mode = #tpu.pipeline_mode<synchronous>, transform_indices = @transform_5, window_bounds = array<i64: 128, 128>}, {pipeline_mode = #tpu.pipeline_mode<synchronous>, transform_indices = @transform_6, window_bounds = array<i64: 1, 128>}, {transform_indices = @transform_7, window_bounds = array<i64: 8, 128>}]} {
    %c0 = arith.constant 0 : index
    %c0_0 = arith.constant 0 : index
    %0 = vector.load %arg1[%c0, %c0_0] : memref<8x784xf32, #tpu.memory_space<vmem>>, vector<8x784xf32>
    %c0_1 = arith.constant 0 : index
    %c0_2 = arith.constant 0 : index
    %1 = vector.load %arg2[%c0_1, %c0_2] : memref<784x128xf32, #tpu.memory_space<vmem>>, vector<784x128xf32>
    %cst = arith.constant dense<0.000000e+00> : vector<8x128xf32>
    %2 = tpu.matmul %0, %1, %cst {dimension_numbers = #tpu.dot_dimension_numbers<[1], [0], [0], [1], [0, 0, 1, 1], [], []>} : vector<8x784xf32>, vector<784x128xf32>, vector<8x128xf32> -> vector<8x128xf32>
    %c0_3 = arith.constant 0 : index
    %c0_4 = arith.constant 0 : index
    %3 = vector.load %arg3[%c0_3, %c0_4] : memref<1x128xf32, #tpu.memory_space<vmem>>, vector<1x128xf32>
    %4 = vector.broadcast %3 : vector<1x128xf32> to vector<8x128xf32>
    %5 = arith.addf %2, %4 : vector<8x128xf32>
    %cst_5 = arith.constant 0.000000e+00 : f32
    %6 = vector.broadcast %cst_5 : f32 to vector<8x128xf32>
    %7 = arith.maximumf %5, %6 : vector<8x128xf32>
    %c0_6 = arith.constant 0 : index
    %c0_7 = arith.constant 0 : index
    %8 = vector.load %arg4[%c0_6, %c0_7] : memref<128x128xf32, #tpu.memory_space<vmem>>, vector<128x128xf32>
    %cst_8 = arith.constant dense<0.000000e+00> : vector<8x128xf32>
    %9 = tpu.matmul %7, %8, %cst_8 {dimension_numbers = #tpu.dot_dimension_numbers<[1], [0], [0], [1], [0, 0, 1, 1], [], []>} : vector<8x128xf32>, vector<128x128xf32>, vector<8x128xf32> -> vector<8x128xf32>
    %c0_9 = arith.constant 0 : index
    %c0_10 = arith.constant 0 : index
    %10 = vector.load %arg5[%c0_9, %c0_10] : memref<1x128xf32, #tpu.memory_space<vmem>>, vector<1x128xf32>
    %11 = vector.broadcast %10 : vector<1x128xf32> to vector<8x128xf32>
    %12 = arith.addf %9, %11 : vector<8x128xf32>
    %cst_11 = arith.constant 0.000000e+00 : f32
    %13 = vector.broadcast %cst_11 : f32 to vector<8x128xf32>
    %14 = arith.maximumf %12, %13 : vector<8x128xf32>
    %c0_12 = arith.constant 0 : index
    %c0_13 = arith.constant 0 : index
    %15 = vector.load %arg6[%c0_12, %c0_13] : memref<128x128xf32, #tpu.memory_space<vmem>>, vector<128x128xf32>
    %cst_14 = arith.constant dense<0.000000e+00> : vector<8x128xf32>
    %16 = tpu.matmul %14, %15, %cst_14 {dimension_numbers = #tpu.dot_dimension_numbers<[1], [0], [0], [1], [0, 0, 1, 1], [], []>} : vector<8x128xf32>, vector<128x128xf32>, vector<8x128xf32> -> vector<8x128xf32>
    %c0_15 = arith.constant 0 : index
    %c0_16 = arith.constant 0 : index
    %17 = vector.load %arg7[%c0_15, %c0_16] : memref<1x128xf32, #tpu.memory_space<vmem>>, vector<1x128xf32>
    %18 = vector.broadcast %17 : vector<1x128xf32> to vector<8x128xf32>
    %19 = arith.addf %16, %18 : vector<8x128xf32>
    %c0_17 = arith.constant 0 : index
    %c0_18 = arith.constant 0 : index
    %20 = vector.load %arg8[%c0_17, %c0_18] : memref<8x128xf32, #tpu.memory_space<vmem>>, vector<8x128xf32>
    tpu.vector_store %arg8[%c0_17, %c0_18], %19 {strides = array<i32>} : memref<8x128xf32, #tpu.memory_space<vmem>>, vector<8x128xf32>,
    return
  }
  func.func @transform_0(%arg0: i32) -> (i32, i32) {
    %c0_i32 = arith.constant 0 : i32
    %c0_i32_0 = arith.constant 0 : i32
    return %arg0, %c0_i32 : i32, i32
  }
  func.func @transform_1(%arg0: i32) -> (i32, i32) {
    %c0_i32 = arith.constant 0 : i32
    %c0_i32_0 = arith.constant 0 : i32
    %c0_i32_1 = arith.constant 0 : i32
    return %c0_i32, %c0_i32_0 : i32, i32
  }
  func.func @transform_2(%arg0: i32) -> (i32, i32) {
    %c0_i32 = arith.constant 0 : i32
    %c0_i32_0 = arith.constant 0 : i32
    %c0_i32_1 = arith.constant 0 : i32
    return %c0_i32, %c0_i32_0 : i32, i32
  }
  func.func @transform_3(%arg0: i32) -> (i32, i32) {
    %c0_i32 = arith.constant 0 : i32
    %c0_i32_0 = arith.constant 0 : i32
    %c0_i32_1 = arith.constant 0 : i32
    return %c0_i32, %c0_i32_0 : i32, i32
  }
  func.func @transform_4(%arg0: i32) -> (i32, i32) {
    %c0_i32 = arith.constant 0 : i32
    %c0_i32_0 = arith.constant 0 : i32
    %c0_i32_1 = arith.constant 0 : i32
    return %c0_i32, %c0_i32_0 : i32, i32
  }
  func.func @transform_5(%arg0: i32) -> (i32, i32) {
    %c0_i32 = arith.constant 0 : i32
    %c0_i32_0 = arith.constant 0 : i32
    %c0_i32_1 = arith.constant 0 : i32
    return %c0_i32, %c0_i32_0 : i32, i32
  }
  func.func @transform_6(%arg0: i32) -> (i32, i32) {
    %c0_i32 = arith.constant 0 : i32
    %c0_i32_0 = arith.constant 0 : i32
    %c0_i32_1 = arith.constant 0 : i32
    return %c0_i32, %c0_i32_0 : i32, i32
  }
  func.func @transform_7(%arg0: i32) -> (i32, i32) {
    %c0_i32 = arith.constant 0 : i32
    %c0_i32_0 = arith.constant 0 : i32
    return %arg0, %c0_i32 : i32, i32
  }
}

</mosaic_0001>

<llo_original>
// kernel: tpu_custom_call.1
$region0: #{tpu_custom_call.1}
  #allocation0 [shape = 'u32[]', space=smem, size = 0x4, offset = 0x4, fixed_abs, tag = 'smem constant byte address 0x4 - core index']
  #allocation1 [shape = 'u32[144,128]{1,0:T(1,128)}', space=vmem, size = 0x12000, scoped, tag = 'internal scratch']
  %s0 = inlined_call_operand.hbm [shape: f32[2,784], index: 0, kind: input, shape index: {}]
  %s1 = inlined_call_operand.hbm [shape: f32[784,128], index: 1, kind: input, shape index: {}]
  %s2 = inlined_call_operand.vmem [shape: f32[1,128], index: 2, kind: input, shape index: {}]
  %s3 = inlined_call_operand.hbm [shape: f32[128,128], index: 3, kind: input, shape index: {}]
  %s4 = inlined_call_operand.vmem [shape: f32[1,128], index: 4, kind: input, shape index: {}]
  %s5 = inlined_call_operand.hbm [shape: f32[128,128], index: 5, kind: input, shape index: {}]
  %s6 = inlined_call_operand.vmem [shape: f32[1,128], index: 6, kind: input, shape index: {}]
  %s7 = inlined_call_operand.hbm [shape: f32[2,128], index: 7, kind: output, shape index: {}]
  %s8 = sld [smem:[#allocation0]]
  $region54: #{tpu_custom_call.1} parent=0
    _
  %s10 = ssub.s32 1, %s8
  %s11 = scalar_select 0, %s10, %s8
  $region1: #{tpu_custom_call.1} parent=0
    #allocation2 [shape = 'u8[28672]{0}', space=vmem, size = 0x7000, scoped, tag = 'input window, operand 0, single buffered']
    #allocation3 [shape = 's32[1]{0}', space=sflag, size = 0x4, scoped, tag = 'scoped memory for tpu_custom_call.1']
    #allocation4 [shape = 's32[1]{0}', space=sflag, size = 0x4, scoped, tag = 'scoped memory for tpu_custom_call.1']
    #allocation5 [shape = 'u8[401408]{0}', space=vmem, size = 0x62000, scoped, tag = 'input window, operand 1, single buffered']
    #allocation6 [shape = 's32[1]{0}', space=sflag, size = 0x4, scoped, tag = 'scoped memory for tpu_custom_call.1']
    #allocation7 [shape = 'u8[65536]{0}', space=vmem, size = 0x10000, scoped, tag = 'input window, operand 3, single buffered']
    #allocation8 [shape = 'u8[65536]{0}', space=vmem, size = 0x10000, scoped, tag = 'input window, operand 5, single buffered']
    #allocation9 [shape = 's32[1]{0}', space=sflag, size = 0x4, scoped, tag = 'scoped memory for tpu_custom_call.1']
    #allocation10 [shape = 'u8[4096]{0}', space=vmem, size = 0x1000, scoped, tag = 'output window, operand 0, single buffered']
    %12 = vsyncpa [#allocation3], 0
    %13 = vsyncpa [#allocation6], 0
    %14 = vsyncpa [#allocation9], 0
    %15 = vsyncpa [#allocation4], 0
    // Predicated region
    $region2: #{tpu_custom_call.1} parent=1 // pred_check
      _
    $region3: #{tpu_custom_call.1} parent=1 // pred_check_branch
      %17 = sbr.rel (0) target = $region5
    $region4: #{tpu_custom_call.1} parent=1 // pred_region
      %s19 = ssub.s32 896, 224
      %20 = vsyncadd [#allocation3], %s19
      %s21 = sshll.u32 [#allocation2], 4
      %s22 = int_to_ptr.vmem [resolvable:$true] %s21
      %27 = dma.hbm_to_vmem [thread:$0]  %s0, 224, %s22, [#allocation3], 224, 224, 14
    $region5: #{tpu_custom_call.1} parent=1 // pred_fallthru
      _
    // Predicated region
    $region6: #{tpu_custom_call.1} parent=1 // pred_check
      _
    $region7: #{tpu_custom_call.1} parent=1 // pred_check_branch
      %29 = sbr.rel (0) target = $region9
    $region8: #{tpu_custom_call.1} parent=1 // pred_region
      %s31 = ssub.s32 12544, 12544
      %32 = vsyncadd [#allocation6], %s31
      %s33 = sshll.u32 [#allocation5], 4
      %s34 = int_to_ptr.vmem [resolvable:$true] %s33
      %39 = dma.hbm_to_vmem [thread:$0]  %s1, 12544, %s34, [#allocation6], 128, 128, 8
    $region9: #{tpu_custom_call.1} parent=1 // pred_fallthru
      _
    // Predicated region
    $region10: #{tpu_custom_call.1} parent=1 // pred_check
      _
    $region11: #{tpu_custom_call.1} parent=1 // pred_check_branch
      %41 = sbr.rel (0) target = $region13
    $region12: #{tpu_custom_call.1} parent=1 // pred_region
      _
    $region13: #{tpu_custom_call.1} parent=1 // pred_fallthru
      _
    // Predicated region
    $region14: #{tpu_custom_call.1} parent=1 // pred_check
      _
    $region15: #{tpu_custom_call.1} parent=1 // pred_check_branch
      %43 = sbr.rel (0) target = $region17
    $region16: #{tpu_custom_call.1} parent=1 // pred_region
      %s45 = ssub.s32 2048, 2048
      %46 = vsyncadd [#allocation6], %s45
      %s47 = sshll.u32 [#allocation7], 4
      %s48 = int_to_ptr.vmem [resolvable:$true] %s47
      %53 = dma.hbm_to_vmem [thread:$0]  %s3, 2048, %s48, [#allocation6], 128, 128, 8
    $region17: #{tpu_custom_call.1} parent=1 // pred_fallthru
      _
    // Predicated region
    $region18: #{tpu_custom_call.1} parent=1 // pred_check
      _
    $region19: #{tpu_custom_call.1} parent=1 // pred_check_branch
      %55 = sbr.rel (0) target = $region21
    $region20: #{tpu_custom_call.1} parent=1 // pred_region
      _
    $region21: #{tpu_custom_call.1} parent=1 // pred_fallthru
      _
    // Predicated region
    $region22: #{tpu_custom_call.1} parent=1 // pred_check
      _
    $region23: #{tpu_custom_call.1} parent=1 // pred_check_branch
      %57 = sbr.rel (0) target = $region25
    $region24: #{tpu_custom_call.1} parent=1 // pred_region
      %s59 = ssub.s32 2048, 2048
      %60 = vsyncadd [#allocation9], %s59
      %s61 = sshll.u32 [#allocation8], 4
      %s62 = int_to_ptr.vmem [resolvable:$true] %s61
      %67 = dma.hbm_to_vmem [thread:$0]  %s5, 2048, %s62, [#allocation9], 128, 128, 8
    $region25: #{tpu_custom_call.1} parent=1 // pred_fallthru
      _
    // Predicated region
    $region26: #{tpu_custom_call.1} parent=1 // pred_check
      _
    $region27: #{tpu_custom_call.1} parent=1 // pred_check_branch
      %69 = sbr.rel (0) target = $region29
    $region28: #{tpu_custom_call.1} parent=1 // pred_region
      _
    $region29: #{tpu_custom_call.1} parent=1 // pred_fallthru
      _
    // Predicated region
    $region30: #{tpu_custom_call.1} parent=1 // pred_check
      _
    $region31: #{tpu_custom_call.1} parent=1 // pred_check_branch
      %71 = sbr.rel (0) target = $region33
    $region32: #{tpu_custom_call.1} parent=1 // pred_region
      %72 = dma.done [#allocation3], 896
    $region33: #{tpu_custom_call.1} parent=1 // pred_fallthru
      _
    // Predicated region
    $region34: #{tpu_custom_call.1} parent=1 // pred_check
      _
    $region35: #{tpu_custom_call.1} parent=1 // pred_check_branch
      %74 = sbr.rel (0) target = $region37
    $region36: #{tpu_custom_call.1} parent=1 // pred_region
      %75 = dma.done [#allocation6], 12544
    $region37: #{tpu_custom_call.1} parent=1 // pred_fallthru
      _
    // Predicated region
    $region38: #{tpu_custom_call.1} parent=1 // pred_check
      _
    $region39: #{tpu_custom_call.1} parent=1 // pred_check_branch
      %77 = sbr.rel (0) target = $region41
    $region40: #{tpu_custom_call.1} parent=1 // pred_region
      %78 = dma.done [#allocation6], 2048
    $region41: #{tpu_custom_call.1} parent=1 // pred_fallthru
      _
    // Predicated region
    $region42: #{tpu_custom_call.1} parent=1 // pred_check
      _
    $region43: #{tpu_custom_call.1} parent=1 // pred_check_branch
      %80 = sbr.rel (0) target = $region45
    $region44: #{tpu_custom_call.1} parent=1 // pred_region
      %81 = dma.done [#allocation9], 2048
    $region45: #{tpu_custom_call.1} parent=1 // pred_fallthru
      _
    %v82 = vld [vmem:[#allocation2] sm:$0xff]
    %v83 = vld [vmem:[#allocation2 + $0x8] sm:$0x3f]
    %v84 = vld [vmem:[#allocation2 + $0xe] sm:$0xff]
    %v85 = vld [vmem:[#allocation2 + $0x16] sm:$0x3f]
    %v86 = vld [vmem:[#allocation2 + $0x1c] sm:$0xff]
    %v87 = vld [vmem:[#allocation2 + $0x24] sm:$0x3f]
    %v88 = vld [vmem:[#allocation2 + $0x2a] sm:$0xff]
    %v89 = vld [vmem:[#allocation2 + $0x32] sm:$0x3f]
    %v90 = vld [vmem:[#allocation5] sm:$0xff]
    %v91 = vld [vmem:[#allocation5 + $0x8] sm:$0xff]
    %v92 = vld [vmem:[#allocation5 + $0x10] sm:$0xff]
    %v93 = vld [vmem:[#allocation5 + $0x18] sm:$0xff]
    %v94 = vld [vmem:[#allocation5 + $0x20] sm:$0xff]
    %v95 = vld [vmem:[#allocation5 + $0x28] sm:$0xff]
    %v96 = vld [vmem:[#allocation5 + $0x30] sm:$0xff]
    %v97 = vld [vmem:[#allocation5 + $0x38] sm:$0xff]
    %v98 = vld [vmem:[#allocation5 + $0x40] sm:$0xff]
    %v99 = vld [vmem:[#allocation5 + $0x48] sm:$0xff]
    %v100 = vld [vmem:[#allocation5 + $0x50] sm:$0xff]
    %v101 = vld [vmem:[#allocation5 + $0x58] sm:$0xff]
    %v102 = vld [vmem:[#allocation5 + $0x60] sm:$0xff]
    %v103 = vld [vmem:[#allocation5 + $0x68] sm:$0xff]
    %v104 = vld [vmem:[#allocation5 + $0x70] sm:$0xff]
    %v105 = vld [vmem:[#allocation5 + $0x78] sm:$0xff]
    %v106 = vld [vmem:[#allocation5 + $0x80] sm:$0xff]
    %v107 = vld [vmem:[#allocation5 + $0x88] sm:$0xff]
    %v108 = vld [vmem:[#allocation5 + $0x90] sm:$0xff]
    %v109 = vld [vmem:[#allocation5 + $0x98] sm:$0xff]
    %v110 = vld [vmem:[#allocation5 + $0xa0] sm:$0xff]
    %v111 = vld [vmem:[#allocation5 + $0xa8] sm:$0xff]
    %v112 = vld [vmem:[#allocation5 + $0xb0] sm:$0xff]
    %v113 = vld [vmem:[#allocation5 + $0xb8] sm:$0xff]
    %v114 = vld [vmem:[#allocation5 + $0xc0] sm:$0xff]
    %v115 = vld [vmem:[#allocation5 + $0xc8] sm:$0xff]
    %v116 = vld [vmem:[#allocation5 + $0xd0] sm:$0xff]
    %v117 = vld [vmem:[#allocation5 + $0xd8] sm:$0xff]
    %v118 = vld [vmem:[#allocation5 + $0xe0] sm:$0xff]
    %v119 = vld [vmem:[#allocation5 + $0xe8] sm:$0xff]
    %v120 = vld [vmem:[#allocation5 + $0xf0] sm:$0xff]
    %v121 = vld [vmem:[#allocation5 + $0xf8] sm:$0xff]
    %v122 = vld [vmem:[#allocation5 + $0x100] sm:$0xff]
    %v123 = vld [vmem:[#allocation5 + $0x108] sm:$0xff]
    %v124 = vld [vmem:[#allocation5 + $0x110] sm:$0xff]
    %v125 = vld [vmem:[#allocation5 + $0x118] sm:$0xff]
    %v126 = vld [vmem:[#allocation5 + $0x120] sm:$0xff]
    %v127 = vld [vmem:[#allocation5 + $0x128] sm:$0xff]
    %v128 = vld [vmem:[#allocation5 + $0x130] sm:$0xff]
    %v129 = vld [vmem:[#allocation5 + $0x138] sm:$0xff]
    %v130 = vld [vmem:[#allocation5 + $0x140] sm:$0xff]
    %v131 = vld [vmem:[#allocation5 + $0x148] sm:$0xff]
    %v132 = vld [vmem:[#allocation5 + $0x150] sm:$0xff]
    %v133 = vld [vmem:[#allocation5 + $0x158] sm:$0xff]
    %v134 = vld [vmem:[#allocation5 + $0x160] sm:$0xff]
    %v135 = vld [vmem:[#allocation5 + $0x168] sm:$0xff]
    %v136 = vld [vmem:[#allocation5 + $0x170] sm:$0xff]
    %v137 = vld [vmem:[#allocation5 + $0x178] sm:$0xff]
    %v138 = vld [vmem:[#allocation5 + $0x180] sm:$0xff]
    %v139 = vld [vmem:[#allocation5 + $0x188] sm:$0xff]
    %v140 = vld [vmem:[#allocation5 + $0x190] sm:$0xff]
    %v141 = vld [vmem:[#allocation5 + $0x198] sm:$0xff]
    %v142 = vld [vmem:[#allocation5 + $0x1a0] sm:$0xff]
    %v143 = vld [vmem:[#allocation5 + $0x1a8] sm:$0xff]
    %v144 = vld [vmem:[#allocation5 + $0x1b0] sm:$0xff]
    %v145 = vld [vmem:[#allocation5 + $0x1b8] sm:$0xff]
    %v146 = vld [vmem:[#allocation5 + $0x1c0] sm:$0xff]
    %v147 = vld [vmem:[#allocation5 + $0x1c8] sm:$0xff]
    %v148 = vld [vmem:[#allocation5 + $0x1d0] sm:$0xff]
    %v149 = vld [vmem:[#allocation5 + $0x1d8] sm:$0xff]
    %v150 = vld [vmem:[#allocation5 + $0x1e0] sm:$0xff]
    %v151 = vld [vmem:[#allocation5 + $0x1e8] sm:$0xff]
    %v152 = vld [vmem:[#allocation5 + $0x1f0] sm:$0xff]
    %v153 = vld [vmem:[#allocation5 + $0x1f8] sm:$0xff]
    %v154 = vld [vmem:[#allocation5 + $0x200] sm:$0xff]
    %v155 = vld [vmem:[#allocation5 + $0x208] sm:$0xff]
    %v156 = vld [vmem:[#allocation5 + $0x210] sm:$0xff]
    %v157 = vld [vmem:[#allocation5 + $0x218] sm:$0xff]
    %v158 = vld [vmem:[#allocation5 + $0x220] sm:$0xff]
    %v159 = vld [vmem:[#allocation5 + $0x228] sm:$0xff]
    %v160 = vld [vmem:[#allocation5 + $0x230] sm:$0xff]
    %v161 = vld [vmem:[#allocation5 + $0x238] sm:$0xff]
    %v162 = vld [vmem:[#allocation5 + $0x240] sm:$0xff]
    %v163 = vld [vmem:[#allocation5 + $0x248] sm:$0xff]
    %v164 = vld [vmem:[#allocation5 + $0x250] sm:$0xff]
    %v165 = vld [vmem:[#allocation5 + $0x258] sm:$0xff]
    %v166 = vld [vmem:[#allocation5 + $0x260] sm:$0xff]
    %v167 = vld [vmem:[#allocation5 + $0x268] sm:$0xff]
    %v168 = vld [vmem:[#allocation5 + $0x270] sm:$0xff]
    %v169 = vld [vmem:[#allocation5 + $0x278] sm:$0xff]
    %v170 = vld [vmem:[#allocation5 + $0x280] sm:$0xff]
    %v171 = vld [vmem:[#allocation5 + $0x288] sm:$0xff]
    %v172 = vld [vmem:[#allocation5 + $0x290] sm:$0xff]
    %v173 = vld [vmem:[#allocation5 + $0x298] sm:$0xff]
    %v174 = vld [vmem:[#allocation5 + $0x2a0] sm:$0xff]
    %v175 = vld [vmem:[#allocation5 + $0x2a8] sm:$0xff]
    %v176 = vld [vmem:[#allocation5 + $0x2b0] sm:$0xff]
    %v177 = vld [vmem:[#allocation5 + $0x2b8] sm:$0xff]
    %v178 = vld [vmem:[#allocation5 + $0x2c0] sm:$0xff]
    %v179 = vld [vmem:[#allocation5 + $0x2c8] sm:$0xff]
    %v180 = vld [vmem:[#allocation5 + $0x2d0] sm:$0xff]
    %v181 = vld [vmem:[#allocation5 + $0x2d8] sm:$0xff]
    %v182 = vld [vmem:[#allocation5 + $0x2e0] sm:$0xff]
    %v183 = vld [vmem:[#allocation5 + $0x2e8] sm:$0xff]
    %v184 = vld [vmem:[#allocation5 + $0x2f0] sm:$0xff]
    %v185 = vld [vmem:[#allocation5 + $0x2f8] sm:$0xff]
    %v186 = vld [vmem:[#allocation5 + $0x300] sm:$0xff]
    %v187 = vld [vmem:[#allocation5 + $0x308] sm:$0xff]
    %v188 = vld [vmem:[%s2] sm:$0x1]
    %v190 = vlaneseq
    %v191 = vshrl.u32 %v190, 7
    %v192 = vsub.s32 0, %v191
    %v193 = vrot.slane %v188, %v192
    %v203 = vcombine.low %v82, %v84
    %v204 = vcombine.high %v82, %v84
    %v205 = vcombine.low %v86, %v88
    %v206 = vcombine.high %v86, %v88
    %v208 = vunpack.c.l.s4 1983009808
    %v209 = vunpack.c.0.s8 %v208
    %v210 = vlaneseq
    %v211 = vshrl.u32 %v210, 7
    %v212 = vsub.s32 %v209, %v211
    %v213 = vrot.slane %v203, %v212
    %v215 = vunpack.c.l.s4 1983009808
    %v216 = vunpack.c.0.s8 %v215
    %v217 = vlaneseq
    %v218 = vshrl.u32 %v217, 7
    %v219 = vsub.s32 %v216, %v218
    %v220 = vrot.slane %v204, %v219
    %v222 = vunpack.c.l.s4 1983009808
    %v223 = vunpack.c.0.s8 %v222
    %v224 = vlaneseq
    %v225 = vshrl.u32 %v224, 7
    %v226 = vsub.s32 %v223, %v225
    %v227 = vrot.slane %v205, %v226
    %v229 = vunpack.c.l.s4 1983009808
    %v230 = vunpack.c.0.s8 %v229
    %v231 = vlaneseq
    %v232 = vshrl.u32 %v231, 7
    %v233 = vsub.s32 %v230, %v232
    %v234 = vrot.slane %v206, %v233
    %v235 = vcombine.low %v213, %v227
    %v236 = vcombine.high %v213, %v227
    %v237 = vcombine.low %v220, %v234
    %v238 = vcombine.high %v220, %v234
    %v239 = vcombine.low %v83, %v85
    %v240 = vcombine.high %v83, %v85
    %v241 = vcombine.low %v87, %v89
    %v242 = vcombine.high %v87, %v89
    %v244 = vunpack.c.l.s4 1983009808
    %v245 = vunpack.c.0.s8 %v244
    %v246 = vlaneseq
    %v247 = vshrl.u32 %v246, 7
    %v248 = vsub.s32 %v245, %v247
    %v249 = vrot.slane %v239, %v248
    %v251 = vunpack.c.l.s4 1983009808
    %v252 = vunpack.c.0.s8 %v251
    %v253 = vlaneseq
    %v254 = vshrl.u32 %v253, 7
    %v255 = vsub.s32 %v252, %v254
    %v256 = vrot.slane %v240, %v255
    %v258 = vunpack.c.l.s4 1983009808
    %v259 = vunpack.c.0.s8 %v258
    %v260 = vlaneseq
    %v261 = vshrl.u32 %v260, 7
    %v262 = vsub.s32 %v259, %v261
    %v263 = vrot.slane %v241, %v262
    %v265 = vunpack.c.l.s4 1983009808
    %v266 = vunpack.c.0.s8 %v265
    %v267 = vlaneseq
    %v268 = vshrl.u32 %v267, 7
    %v269 = vsub.s32 %v266, %v268
    %v270 = vrot.slane %v242, %v269
    %v271 = vcombine.low %v249, %v263
    %v272 = vcombine.high %v249, %v263
    %v273 = vcombine.low %v256, %v270
    %vm280 = vcmask 130048
    %v281 = vsel %vm280, %v273, 0
    %283 = vmatprep.subr.mxu0 0.0
    %284 = vmatpush1.msra.mxu0 %v90
    %285 = vmatprep.subr.mxu0 0.0
    %286 = vmatpush1.msra.mxu0 %v91
    %287 = vmatprep.subr.mxu0 0.0
    %288 = vmatpush1.msra.mxu0 %v92
    %289 = vmatprep.subr.mxu0 0.0
    %290 = vmatpush1.msra.mxu0 %v93
    %291 = vmatprep.subr.mxu0 0.0
    %292 = vmatpush1.msra.mxu0 %v94
    %293 = vmatprep.subr.mxu0 0.0
    %294 = vmatpush1.msra.mxu0 %v95
    %295 = vmatprep.subr.mxu0 0.0
    %296 = vmatpush1.msra.mxu0 %v96
    %297 = vmatprep.subr.mxu0 0.0
    %298 = vmatpush1.msra.mxu0 %v97
    %299 = vmatprep.subr.mxu0 0.0
    %300 = vmatpush1.msra.mxu0 %v98
    %301 = vmatprep.subr.mxu0 0.0
    %302 = vmatpush1.msra.mxu0 %v99
    %303 = vmatprep.subr.mxu0 0.0
    %304 = vmatpush1.msra.mxu0 %v100
    %305 = vmatprep.subr.mxu0 0.0
    %306 = vmatpush1.msra.mxu0 %v101
    %307 = vmatprep.subr.mxu0 0.0
    %308 = vmatpush1.msra.mxu0 %v102
    %309 = vmatprep.subr.mxu0 0.0
    %310 = vmatpush1.msra.mxu0 %v103
    %311 = vmatprep.subr.mxu0 0.0
    %312 = vmatpush1.msra.mxu0 %v104
    %313 = vmatprep.subr.mxu0 0.0
    %314 = vmatpush1.msra.mxu0 %v105
    %315 = vmatprep.subr.mxu0 0.0
    %316 = vmatpush1.msra.mxu0 %v106
    %317 = vmatprep.subr.mxu0 0.0
    %318 = vmatpush1.msra.mxu0 %v107
    %319 = vmatprep.subr.mxu0 0.0
    %320 = vmatpush1.msra.mxu0 %v108
    %321 = vmatprep.subr.mxu0 0.0
    %322 = vmatpush1.msra.mxu0 %v109
    %323 = vmatprep.subr.mxu0 0.0
    %324 = vmatpush1.msra.mxu0 %v110
    %325 = vmatprep.subr.mxu0 0.0
    %326 = vmatpush1.msra.mxu0 %v111
    %327 = vmatprep.subr.mxu0 0.0
    %328 = vmatpush1.msra.mxu0 %v112
    %329 = vmatprep.subr.mxu0 0.0
    %330 = vmatpush1.msra.mxu0 %v113
    %331 = vmatprep.subr.mxu0 0.0
    %332 = vmatpush1.msra.mxu0 %v114
    %333 = vmatprep.subr.mxu0 0.0
    %334 = vmatpush1.msra.mxu0 %v115
    %335 = vmatprep.subr.mxu0 0.0
    %336 = vmatpush1.msra.mxu0 %v116
    %337 = vmatprep.subr.mxu0 0.0
    %338 = vmatpush1.msra.mxu0 %v117
    %339 = vmatprep.subr.mxu0 0.0
    %340 = vmatpush1.msra.mxu0 %v118
    %341 = vmatprep.subr.mxu0 0.0
    %342 = vmatpush1.msra.mxu0 %v119
    %343 = vmatprep.subr.mxu0 0.0
    %344 = vmatpush1.msra.mxu0 %v120
    %345 = vmatprep.subr.mxu0 0.0
    %346 = vmatpush1.msra.mxu0 %v121
    %347 = vmatprep.mubr.f32.mxu0 %v236
    %348 = vmatmul.mubr.f32.gmra.mrb[0].mxu0 %v235
    %v349 = vpop.f32.mrb[0].mxu0
    %v350 = vadd.f32 %v193, %v349
    %v351 = vpop.f32.mrb[0].mxu0
    %352 = vdwg.mxu0
    %353 = vmatprep.subr.mxu0 0.0
    %354 = vmatpush1.msra.mxu0 %v122
    %355 = vmatprep.subr.mxu0 0.0
    %356 = vmatpush1.msra.mxu0 %v123
    %357 = vmatprep.subr.mxu0 0.0
    %358 = vmatpush1.msra.mxu0 %v124
    %359 = vmatprep.subr.mxu0 0.0
    %360 = vmatpush1.msra.mxu0 %v125
    %361 = vmatprep.subr.mxu0 0.0
    %362 = vmatpush1.msra.mxu0 %v126
    %363 = vmatprep.subr.mxu0 0.0
    %364 = vmatpush1.msra.mxu0 %v127
    %365 = vmatprep.subr.mxu0 0.0
    %366 = vmatpush1.msra.mxu0 %v128
    %367 = vmatprep.subr.mxu0 0.0
    %368 = vmatpush1.msra.mxu0 %v129
    %369 = vmatprep.subr.mxu0 0.0
    %370 = vmatpush1.msra.mxu0 %v130
    %371 = vmatprep.subr.mxu0 0.0
    %372 = vmatpush1.msra.mxu0 %v131
    %373 = vmatprep.subr.mxu0 0.0
    %374 = vmatpush1.msra.mxu0 %v132
    %375 = vmatprep.subr.mxu0 0.0
    %376 = vmatpush1.msra.mxu0 %v133
    %377 = vmatprep.subr.mxu0 0.0
    %378 = vmatpush1.msra.mxu0 %v134
    %379 = vmatprep.subr.mxu0 0.0
    %380 = vmatpush1.msra.mxu0 %v135
    %381 = vmatprep.subr.mxu0 0.0
    %382 = vmatpush1.msra.mxu0 %v136
    %383 = vmatprep.subr.mxu0 0.0
    %384 = vmatpush1.msra.mxu0 %v137
    %385 = vmatprep.subr.mxu0 0.0
    %386 = vmatpush1.msra.mxu0 %v138
    %387 = vmatprep.subr.mxu0 0.0
    %388 = vmatpush1.msra.mxu0 %v139
    %389 = vmatprep.subr.mxu0 0.0
    %390 = vmatpush1.msra.mxu0 %v140
    %391 = vmatprep.subr.mxu0 0.0
    %392 = vmatpush1.msra.mxu0 %v141
    %393 = vmatprep.subr.mxu0 0.0
    %394 = vmatpush1.msra.mxu0 %v142
    %395 = vmatprep.subr.mxu0 0.0
    %396 = vmatpush1.msra.mxu0 %v143
    %397 = vmatprep.subr.mxu0 0.0
    %398 = vmatpush1.msra.mxu0 %v144
    %399 = vmatprep.subr.mxu0 0.0
    %400 = vmatpush1.msra.mxu0 %v145
    %401 = vmatprep.subr.mxu0 0.0
    %402 = vmatpush1.msra.mxu0 %v146
    %403 = vmatprep.subr.mxu0 0.0
    %404 = vmatpush1.msra.mxu0 %v147
    %405 = vmatprep.subr.mxu0 0.0
    %406 = vmatpush1.msra.mxu0 %v148
    %407 = vmatprep.subr.mxu0 0.0
    %408 = vmatpush1.msra.mxu0 %v149
    %409 = vmatprep.subr.mxu0 0.0
    %410 = vmatpush1.msra.mxu0 %v150
    %411 = vmatprep.subr.mxu0 0.0
    %412 = vmatpush1.msra.mxu0 %v151
    %413 = vmatprep.subr.mxu0 0.0
    %414 = vmatpush1.msra.mxu0 %v152
    %415 = vmatprep.subr.mxu0 0.0
    %416 = vmatpush1.msra.mxu0 %v153
    %417 = vmatprep.mubr.f32.mxu0 %v238
    %418 = vmatmul.mubr.f32.gmra.mrb[0].mxu0 %v237
    %v419 = vpop.f32.mrb[0].mxu0
    %v420 = vadd.f32 %v350, %v419
    %v421 = vpop.f32.mrb[0].mxu0
    %422 = vdwg.mxu0
    %423 = vmatprep.subr.mxu0 0.0
    %424 = vmatpush1.msra.mxu0 %v154
    %425 = vmatprep.subr.mxu0 0.0
    %426 = vmatpush1.msra.mxu0 %v155
    %427 = vmatprep.subr.mxu0 0.0
    %428 = vmatpush1.msra.mxu0 %v156
    %429 = vmatprep.subr.mxu0 0.0
    %430 = vmatpush1.msra.mxu0 %v157
    %431 = vmatprep.subr.mxu0 0.0
    %432 = vmatpush1.msra.mxu0 %v158
    %433 = vmatprep.subr.mxu0 0.0
    %434 = vmatpush1.msra.mxu0 %v159
    %435 = vmatprep.subr.mxu0 0.0
    %436 = vmatpush1.msra.mxu0 %v160
    %437 = vmatprep.subr.mxu0 0.0
    %438 = vmatpush1.msra.mxu0 %v161
    %439 = vmatprep.subr.mxu0 0.0
    %440 = vmatpush1.msra.mxu0 %v162
    %441 = vmatprep.subr.mxu0 0.0
    %442 = vmatpush1.msra.mxu0 %v163
    %443 = vmatprep.subr.mxu0 0.0
    %444 = vmatpush1.msra.mxu0 %v164
    %445 = vmatprep.subr.mxu0 0.0
    %446 = vmatpush1.msra.mxu0 %v165
    %447 = vmatprep.subr.mxu0 0.0
    %448 = vmatpush1.msra.mxu0 %v166
    %449 = vmatprep.subr.mxu0 0.0
    %450 = vmatpush1.msra.mxu0 %v167
    %451 = vmatprep.subr.mxu0 0.0
    %452 = vmatpush1.msra.mxu0 %v168
    %453 = vmatprep.subr.mxu0 0.0
    %454 = vmatpush1.msra.mxu0 %v169
    %455 = vmatprep.subr.mxu0 0.0
    %456 = vmatpush1.msra.mxu0 %v170
    %457 = vmatprep.subr.mxu0 0.0
    %458 = vmatpush1.msra.mxu0 %v171
    %459 = vmatprep.subr.mxu0 0.0
    %460 = vmatpush1.msra.mxu0 %v172
    %461 = vmatprep.subr.mxu0 0.0
    %462 = vmatpush1.msra.mxu0 %v173
    %463 = vmatprep.subr.mxu0 0.0
    %464 = vmatpush1.msra.mxu0 %v174
    %465 = vmatprep.subr.mxu0 0.0
    %466 = vmatpush1.msra.mxu0 %v175
    %467 = vmatprep.subr.mxu0 0.0
    %468 = vmatpush1.msra.mxu0 %v176
    %469 = vmatprep.subr.mxu0 0.0
    %470 = vmatpush1.msra.mxu0 %v177
    %471 = vmatprep.subr.mxu0 0.0
    %472 = vmatpush1.msra.mxu0 %v178
    %473 = vmatprep.subr.mxu0 0.0
    %474 = vmatpush1.msra.mxu0 %v179
    %475 = vmatprep.subr.mxu0 0.0
    %476 = vmatpush1.msra.mxu0 %v180
    %477 = vmatprep.subr.mxu0 0.0
    %478 = vmatpush1.msra.mxu0 %v181
    %479 = vmatprep.subr.mxu0 0.0
    %480 = vmatpush1.msra.mxu0 %v182
    %481 = vmatprep.subr.mxu0 0.0
    %482 = vmatpush1.msra.mxu0 %v183
    %483 = vmatprep.subr.mxu0 0.0
    %484 = vmatpush1.msra.mxu0 %v184
    %485 = vmatprep.subr.mxu0 0.0
    %486 = vmatpush1.msra.mxu0 %v185
    %487 = vmatprep.mubr.f32.mxu0 %v272
    %488 = vmatmul.mubr.f32.gmra.mrb[0].mxu0 %v271
    %v489 = vpop.f32.mrb[0].mxu0
    %v490 = vadd.f32 %v420, %v489
    %v491 = vpop.f32.mrb[0].mxu0
    %492 = vdwg.mxu0
    %493 = vmatprep.subr.mxu0 0.0
    %494 = vmatpush1.msra.mxu0 %v186
    %495 = vmatprep.subr.mxu0 0.0
    %496 = vmatpush1.msra.mxu0 %v187
    %497 = vmatprep.subr.mxu0 0.0
    %498 = vmatpush1.msra.mxu0 0.0
    %499 = vmatprep.subr.mxu0 0.0
    %500 = vmatpush1.msra.mxu0 0.0
    %501 = vmatprep.subr.mxu0 0.0
    %502 = vmatpush1.msra.mxu0 0.0
    %503 = vmatprep.subr.mxu0 0.0
    %504 = vmatpush1.msra.mxu0 0.0
    %505 = vmatprep.subr.mxu0 0.0
    %506 = vmatpush1.msra.mxu0 0.0
    %507 = vmatprep.subr.mxu0 0.0
    %508 = vmatpush1.msra.mxu0 0.0
    %509 = vmatprep.subr.mxu0 0.0
    %510 = vmatpush1.msra.mxu0 0.0
    %511 = vmatprep.subr.mxu0 0.0
    %512 = vmatpush1.msra.mxu0 0.0
    %513 = vmatprep.subr.mxu0 0.0
    %514 = vmatpush1.msra.mxu0 0.0
    %515 = vmatprep.subr.mxu0 0.0
    %516 = vmatpush1.msra.mxu0 0.0
    %517 = vmatprep.subr.mxu0 0.0
    %518 = vmatpush1.msra.mxu0 0.0
    %519 = vmatprep.subr.mxu0 0.0
    %520 = vmatpush1.msra.mxu0 0.0
    %521 = vmatprep.subr.mxu0 0.0
    %522 = vmatpush1.msra.mxu0 0.0
    %523 = vmatprep.subr.mxu0 0.0
    %524 = vmatpush1.msra.mxu0 0.0
    %525 = vmatprep.subr.mxu0 0.0
    %526 = vmatpush1.msra.mxu0 0.0
    %527 = vmatprep.subr.mxu0 0.0
    %528 = vmatpush1.msra.mxu0 0.0
    %529 = vmatprep.subr.mxu0 0.0
    %530 = vmatpush1.msra.mxu0 0.0
    %531 = vmatprep.subr.mxu0 0.0
    %532 = vmatpush1.msra.mxu0 0.0
    %533 = vmatprep.subr.mxu0 0.0
    %534 = vmatpush1.msra.mxu0 0.0
    %535 = vmatprep.subr.mxu0 0.0
    %536 = vmatpush1.msra.mxu0 0.0
    %537 = vmatprep.subr.mxu0 0.0
    %538 = vmatpush1.msra.mxu0 0.0
    %539 = vmatprep.subr.mxu0 0.0
    %540 = vmatpush1.msra.mxu0 0.0
    %541 = vmatprep.subr.mxu0 0.0
    %542 = vmatpush1.msra.mxu0 0.0
    %543 = vmatprep.subr.mxu0 0.0
    %544 = vmatpush1.msra.mxu0 0.0
    %545 = vmatprep.subr.mxu0 0.0
    %546 = vmatpush1.msra.mxu0 0.0
    %547 = vmatprep.subr.mxu0 0.0
    %548 = vmatpush1.msra.mxu0 0.0
    %549 = vmatprep.subr.mxu0 0.0
    %550 = vmatpush1.msra.mxu0 0.0
    %551 = vmatprep.subr.mxu0 0.0
    %552 = vmatpush1.msra.mxu0 0.0
    %553 = vmatprep.subr.mxu0 0.0
    %554 = vmatpush1.msra.mxu0 0.0
    %555 = vmatprep.subr.mxu0 0.0
    %556 = vmatpush1.msra.mxu0 0.0
    %557 = vmatprep.mubr.f32.mxu0 0.0
    %558 = vmatmul.mubr.f32.gmra.mrb[0].mxu0 %v281
    %v559 = vpop.f32.mrb[0].mxu0
    %v560 = vadd.f32 %v490, %v559
    %v561 = vpop.f32.mrb[0].mxu0
    %562 = vdwg.mxu0
    %v563 = vmax.f32 %v560, 0.0
    %v564 = vld [vmem:[#allocation7] sm:$0xff]
    %v565 = vld [vmem:[#allocation7 + $0x8] sm:$0xff]
    %v566 = vld [vmem:[#allocation7 + $0x10] sm:$0xff]
    %v567 = vld [vmem:[#allocation7 + $0x18] sm:$0xff]
    %v568 = vld [vmem:[#allocation7 + $0x20] sm:$0xff]
    %v569 = vld [vmem:[#allocation7 + $0x28] sm:$0xff]
    %v570 = vld [vmem:[#allocation7 + $0x30] sm:$0xff]
    %v571 = vld [vmem:[#allocation7 + $0x38] sm:$0xff]
    %v572 = vld [vmem:[#allocation7 + $0x40] sm:$0xff]
    %v573 = vld [vmem:[#allocation7 + $0x48] sm:$0xff]
    %v574 = vld [vmem:[#allocation7 + $0x50] sm:$0xff]
    %v575 = vld [vmem:[#allocation7 + $0x58] sm:$0xff]
    %v576 = vld [vmem:[#allocation7 + $0x60] sm:$0xff]
    %v577 = vld [vmem:[#allocation7 + $0x68] sm:$0xff]
    %v578 = vld [vmem:[#allocation7 + $0x70] sm:$0xff]
    %v579 = vld [vmem:[#allocation7 + $0x78] sm:$0xff]
    %v580 = vld [vmem:[%s4] sm:$0x1]
    %v582 = vlaneseq
    %v583 = vshrl.u32 %v582, 7
    %v584 = vsub.s32 0, %v583
    %v585 = vrot.slane %v580, %v584
    %587 = vmatprep.subr.mxu0 0.0
    %588 = vmatpush1.msra.mxu0 %v564
    %589 = vmatprep.subr.mxu0 0.0
    %590 = vmatpush1.msra.mxu0 %v565
    %591 = vmatprep.subr.mxu0 0.0
    %592 = vmatpush1.msra.mxu0 %v566
    %593 = vmatprep.subr.mxu0 0.0
    %594 = vmatpush1.msra.mxu0 %v567
    %595 = vmatprep.subr.mxu0 0.0
    %596 = vmatpush1.msra.mxu0 %v568
    %597 = vmatprep.subr.mxu0 0.0
    %598 = vmatpush1.msra.mxu0 %v569
    %599 = vmatprep.subr.mxu0 0.0
    %600 = vmatpush1.msra.mxu0 %v570
    %601 = vmatprep.subr.mxu0 0.0
    %602 = vmatpush1.msra.mxu0 %v571
    %603 = vmatprep.subr.mxu0 0.0
    %604 = vmatpush1.msra.mxu0 %v572
    %605 = vmatprep.subr.mxu0 0.0
    %606 = vmatpush1.msra.mxu0 %v573
    %607 = vmatprep.subr.mxu0 0.0
    %608 = vmatpush1.msra.mxu0 %v574
    %609 = vmatprep.subr.mxu0 0.0
    %610 = vmatpush1.msra.mxu0 %v575
    %611 = vmatprep.subr.mxu0 0.0
    %612 = vmatpush1.msra.mxu0 %v576
    %613 = vmatprep.subr.mxu0 0.0
    %614 = vmatpush1.msra.mxu0 %v577
    %615 = vmatprep.subr.mxu0 0.0
    %616 = vmatpush1.msra.mxu0 %v578
    %617 = vmatprep.subr.mxu0 0.0
    %618 = vmatpush1.msra.mxu0 %v579
    %619 = vmatprep.subr.mxu0 0.0
    %620 = vmatpush1.msra.mxu0 0.0
    %621 = vmatprep.subr.mxu0 0.0
    %622 = vmatpush1.msra.mxu0 0.0
    %623 = vmatprep.subr.mxu0 0.0
    %624 = vmatpush1.msra.mxu0 0.0
    %625 = vmatprep.subr.mxu0 0.0
    %626 = vmatpush1.msra.mxu0 0.0
    %627 = vmatprep.subr.mxu0 0.0
    %628 = vmatpush1.msra.mxu0 0.0
    %629 = vmatprep.subr.mxu0 0.0
    %630 = vmatpush1.msra.mxu0 0.0
    %631 = vmatprep.subr.mxu0 0.0
    %632 = vmatpush1.msra.mxu0 0.0
    %633 = vmatprep.subr.mxu0 0.0
    %634 = vmatpush1.msra.mxu0 0.0
    %635 = vmatprep.subr.mxu0 0.0
    %636 = vmatpush1.msra.mxu0 0.0
    %637 = vmatprep.subr.mxu0 0.0
    %638 = vmatpush1.msra.mxu0 0.0
    %639 = vmatprep.subr.mxu0 0.0
    %640 = vmatpush1.msra.mxu0 0.0
    %641 = vmatprep.subr.mxu0 0.0
    %642 = vmatpush1.msra.mxu0 0.0
    %643 = vmatprep.subr.mxu0 0.0
    %644 = vmatpush1.msra.mxu0 0.0
    %645 = vmatprep.subr.mxu0 0.0
    %646 = vmatpush1.msra.mxu0 0.0
    %647 = vmatprep.subr.mxu0 0.0
    %648 = vmatpush1.msra.mxu0 0.0
    %649 = vmatprep.subr.mxu0 0.0
    %650 = vmatpush1.msra.mxu0 0.0
    %651 = vmatprep.mubr.f32.mxu0 0.0
    %652 = vmatmul.mubr.f32.gmra.mrb[0].mxu0 %v563
    %v653 = vpop.f32.mrb[0].mxu0
    %v654 = vadd.f32 %v585, %v653
    %v655 = vpop.f32.mrb[0].mxu0
    %656 = vdwg.mxu0
    %v657 = vmax.f32 %v654, 0.0
    %v658 = vld [vmem:[#allocation8] sm:$0xff]
    %v659 = vld [vmem:[#allocation8 + $0x8] sm:$0xff]
    %v660 = vld [vmem:[#allocation8 + $0x10] sm:$0xff]
    %v661 = vld [vmem:[#allocation8 + $0x18] sm:$0xff]
    %v662 = vld [vmem:[#allocation8 + $0x20] sm:$0xff]
    %v663 = vld [vmem:[#allocation8 + $0x28] sm:$0xff]
    %v664 = vld [vmem:[#allocation8 + $0x30] sm:$0xff]
    %v665 = vld [vmem:[#allocation8 + $0x38] sm:$0xff]
    %v666 = vld [vmem:[#allocation8 + $0x40] sm:$0xff]
    %v667 = vld [vmem:[#allocation8 + $0x48] sm:$0xff]
    %v668 = vld [vmem:[#allocation8 + $0x50] sm:$0xff]
    %v669 = vld [vmem:[#allocation8 + $0x58] sm:$0xff]
    %v670 = vld [vmem:[#allocation8 + $0x60] sm:$0xff]
    %v671 = vld [vmem:[#allocation8 + $0x68] sm:$0xff]
    %v672 = vld [vmem:[#allocation8 + $0x70] sm:$0xff]
    %v673 = vld [vmem:[#allocation8 + $0x78] sm:$0xff]
    %v674 = vld [vmem:[%s6] sm:$0x1]
    %v676 = vlaneseq
    %v677 = vshrl.u32 %v676, 7
    %v678 = vsub.s32 0, %v677
    %v679 = vrot.slane %v674, %v678
    %681 = vmatprep.subr.mxu0 0.0
    %682 = vmatpush1.msra.mxu0 %v658
    %683 = vmatprep.subr.mxu0 0.0
    %684 = vmatpush1.msra.mxu0 %v659
    %685 = vmatprep.subr.mxu0 0.0
    %686 = vmatpush1.msra.mxu0 %v660
    %687 = vmatprep.subr.mxu0 0.0
    %688 = vmatpush1.msra.mxu0 %v661
    %689 = vmatprep.subr.mxu0 0.0
    %690 = vmatpush1.msra.mxu0 %v662
    %691 = vmatprep.subr.mxu0 0.0
    %692 = vmatpush1.msra.mxu0 %v663
    %693 = vmatprep.subr.mxu0 0.0
    %694 = vmatpush1.msra.mxu0 %v664
    %695 = vmatprep.subr.mxu0 0.0
    %696 = vmatpush1.msra.mxu0 %v665
    %697 = vmatprep.subr.mxu0 0.0
    %698 = vmatpush1.msra.mxu0 %v666
    %699 = vmatprep.subr.mxu0 0.0
    %700 = vmatpush1.msra.mxu0 %v667
    %701 = vmatprep.subr.mxu0 0.0
    %702 = vmatpush1.msra.mxu0 %v668
    %703 = vmatprep.subr.mxu0 0.0
    %704 = vmatpush1.msra.mxu0 %v669
    %705 = vmatprep.subr.mxu0 0.0
    %706 = vmatpush1.msra.mxu0 %v670
    %707 = vmatprep.subr.mxu0 0.0
    %708 = vmatpush1.msra.mxu0 %v671
    %709 = vmatprep.subr.mxu0 0.0
    %710 = vmatpush1.msra.mxu0 %v672
    %711 = vmatprep.subr.mxu0 0.0
    %712 = vmatpush1.msra.mxu0 %v673
    %713 = vmatprep.subr.mxu0 0.0
    %714 = vmatpush1.msra.mxu0 0.0
    %715 = vmatprep.subr.mxu0 0.0
    %716 = vmatpush1.msra.mxu0 0.0
    %717 = vmatprep.subr.mxu0 0.0
    %718 = vmatpush1.msra.mxu0 0.0
    %719 = vmatprep.subr.mxu0 0.0
    %720 = vmatpush1.msra.mxu0 0.0
    %721 = vmatprep.subr.mxu0 0.0
    %722 = vmatpush1.msra.mxu0 0.0
    %723 = vmatprep.subr.mxu0 0.0
    %724 = vmatpush1.msra.mxu0 0.0
    %725 = vmatprep.subr.mxu0 0.0
    %726 = vmatpush1.msra.mxu0 0.0
    %727 = vmatprep.subr.mxu0 0.0
    %728 = vmatpush1.msra.mxu0 0.0
    %729 = vmatprep.subr.mxu0 0.0
    %730 = vmatpush1.msra.mxu0 0.0
    %731 = vmatprep.subr.mxu0 0.0
    %732 = vmatpush1.msra.mxu0 0.0
    %733 = vmatprep.subr.mxu0 0.0
    %734 = vmatpush1.msra.mxu0 0.0
    %735 = vmatprep.subr.mxu0 0.0
    %736 = vmatpush1.msra.mxu0 0.0
    %737 = vmatprep.subr.mxu0 0.0
    %738 = vmatpush1.msra.mxu0 0.0
    %739 = vmatprep.subr.mxu0 0.0
    %740 = vmatpush1.msra.mxu0 0.0
    %741 = vmatprep.subr.mxu0 0.0
    %742 = vmatpush1.msra.mxu0 0.0
    %743 = vmatprep.subr.mxu0 0.0
    %744 = vmatpush1.msra.mxu0 0.0
    %745 = vmatprep.mubr.f32.mxu0 0.0
    %746 = vmatmul.mubr.f32.gmra.mrb[0].mxu0 %v657
    %v747 = vpop.f32.mrb[0].mxu0
    %v748 = vadd.f32 %v679, %v747
    %v749 = vpop.f32.mrb[0].mxu0
    %750 = vdwg.mxu0
    %751 = vst [vmem:[#allocation10] sm:$0xff] %v748
    // Predicated region
    $region46: #{tpu_custom_call.1} parent=1 // pred_check
      _
    $region47: #{tpu_custom_call.1} parent=1 // pred_check_branch
      %753 = sbr.rel (0) target = $region49
    $region48: #{tpu_custom_call.1} parent=1 // pred_region
      %s755 = ssub.s32 128, 32
      %756 = vsyncadd [#allocation4], %s755
      %s757 = sshll.u32 [#allocation10], 4
      %s758 = int_to_ptr.vmem [resolvable:$true] %s757
      %763 = dma.vmem_to_hbm [thread:$0]  %s758, 32, %s7, [#allocation4], 32, 32, 2
    $region49: #{tpu_custom_call.1} parent=1 // pred_fallthru
      _
    // Predicated region
    $region50: #{tpu_custom_call.1} parent=1 // pred_check
      _
    $region51: #{tpu_custom_call.1} parent=1 // pred_check_branch
      %765 = sbr.rel (0) target = $region53
    $region52: #{tpu_custom_call.1} parent=1 // pred_region
      %766 = dma.done [#allocation4], 128
    $region53: #{tpu_custom_call.1} parent=1 // pred_fallthru
      _
    %767 = vsyncpa [#allocation3], 1
    %768 = vsyncpa [#allocation6], 1
    %769 = vsyncpa [#allocation9], 1
    %770 = vsyncpa [#allocation4], 1

</llo_original>
